<compile_context>
chip_gen: v5e
topology: v5e:2x2
jax: 0.10.0
libtpu: 0.0.40
codegen_flags: <defaults>
</compile_context>

<pallas_src>
import functools

import jax
import jax.numpy as jnp
from jax.experimental import pallas as pl
from jax.experimental.pallas import tpu as pltpu


def _supcon_kernel(anchor_ref, contrast_t_ref, lab_col_ref, lab_row_ref,
                   npos_ref, out_ref, *, inv_temperature, loss_scale, n_valid,
                   lane_out):
    # anchor_ref:     [TM, Dp]  anchor feature row block (streamed per grid step)
    # contrast_t_ref: [Dp, Np]  full contrast features, pre-transposed (resident)
    # lab_col_ref:    [TM, 1]   int32 labels for this row block
    # lab_row_ref:    [1,  Np]  int32 labels for all contrast columns (resident)
    # npos_ref:       [TM, 1]   f32 positives per anchor (excl. self), precomputed
    # out_ref:        [1,1,TM]  (lane_out) or [TM, 1]  per-anchor loss
    tm = anchor_ref.shape[0]
    n_pad = contrast_t_ref.shape[1]
    i = pl.program_id(0)

    # Fold 1/temperature into the small [TM, Dp] block (Dp << Np) instead of
    # scaling the [TM, Np] similarity slab.
    a = anchor_ref[...] * inv_temperature

    # Canonical MXU contraction: K (= Dp) sits on the sublane axis of the
    # resident RHS; f32 accumulation. No per-step transpose of the big operand.
    sim = jnp.dot(a, contrast_t_ref[...], preferred_element_type=jnp.float32)

    # Row-max shift (incl. self) for numerical stability; the loss is
    # shift-invariant, so including zero-padded columns in the max is harmless.
    logits = sim - jnp.max(sim, axis=1, keepdims=True)

    # Predicates only -- never materialized as f32 [TM, Np] masks.
    row_ids = i * tm + jax.lax.broadcasted_iota(jnp.int32, (tm, 1), 0)
    col_ids = jax.lax.broadcasted_iota(jnp.int32, (1, n_pad), 1)
    excl = jnp.logical_or(row_ids == col_ids, col_ids >= n_valid)  # self + pad

    # Self/pad exclusion folded into the exp (exp(-inf) == 0).
    exp_logits = jnp.exp(jnp.where(excl, -jnp.inf, logits))
    log_denom = jnp.log(jnp.sum(exp_logits, axis=1, keepdims=True))   # [TM, 1]

    pos = jnp.logical_and(lab_col_ref[...] == lab_row_ref[...],
                          jnp.logical_not(excl))
    sum_pos_logits = jnp.sum(jnp.where(pos, logits, 0.0), axis=1, keepdims=True)

    # Fused: sum(pos * (logits - log_denom)) / num_pos
    #      = sum_pos_logits / num_pos - log_denom  (no [TM, Np] log_prob slab).
    # num_pos == 0 yields NaN, matching the PyTorch reference.
    mean_log_prob_pos = sum_pos_logits / npos_ref[...] - log_denom
    loss_col = (-loss_scale) * mean_log_prob_pos                       # [TM, 1]

    if lane_out:
        out_ref[...] = loss_col.reshape(1, 1, tm)   # lane-dense store
    else:
        out_ref[...] = loss_col                     # conservative column store


def _pick_tile(n, d_pad, itemsize, vmem_budget):
    """Pick the row tile TM from the VMEM budget (multiple of 8 in [8, 256])."""
    n8 = ((n + 7) // 8) * 8
    # Resident: single-buffered [Dp, Np] features + lane-dense label row.
    resident = d_pad * n8 * itemsize + n8 * 4
    # Per anchor row: ~6 live f32 [*, Np] slabs + double-buffered [*, Dp] anchor
    # stream + narrow label/count/output columns.
    per_row = 6 * n8 * 4 + 2 * d_pad * itemsize + 32
    avail = vmem_budget - resident - (2 << 20)
    tm = avail // per_row if avail > 0 else 8
    tm = int(max(8, min(256, tm)) // 8 * 8)
    if n8 >= 16:  # keep >= 2 grid steps so megacore / both v7x TCs can split rows
        tm = min(tm, max(8, (n8 // 2) // 8 * 8))
    n_pad = ((n + tm - 1) // tm) * tm
    return tm, n_pad


def supcon_loss(features, labels, temperature=0.1, base_temperature=0.07,
                feature_dtype=None):
    """features: [bsz, n_views, dim]; labels: [bsz] int. Returns scalar loss."""
    if features.ndim != 3:
        raise ValueError("features needs to be [bsz, n_views, dim]")
    bsz, n_views, dim = features.shape
    n = bsz * n_views

    # contrast_feature = cat(unbind(features, dim=1), dim=0): view-major stack.
    contrast = jnp.transpose(features, (1, 0, 2)).reshape(n, dim)

    # Keep large f32 feature slabs resident in bf16 (f32 accumulation in-kernel):
    # halves resident VMEM and roughly doubles MXU rate on v6e/v7x. Tiny inputs
    # keep their dtype (negligible residency, keeps strict f32 agreement).
    if feature_dtype is None:
        if contrast.dtype == jnp.float32 and n * dim * 4 > (4 << 20):
            feature_dtype = jnp.bfloat16
        else:
            feature_dtype = contrast.dtype
    contrast = contrast.astype(feature_dtype)
    itemsize = jnp.dtype(feature_dtype).itemsize

    # Generation-aware VMEM ceiling (v7x: 64 MiB/TC, v5e/v6e: 128 MiB).
    try:
        vmem_cap = int(pltpu.get_tpu_info().vmem_capacity_bytes)
    except Exception:
        vmem_cap = 64 * 1024 * 1024
    vmem_budget = max(vmem_cap - (8 << 20), 16 << 20)

    d_pad = ((dim + 127) // 128) * 128
    tm, n_pad = _pick_tile(n, d_pad, itemsize, vmem_budget)
    grid = n_pad // tm

    # Zero-pad D (lane-dense) and N (row blocks). Padded columns are excluded in
    # the kernel; padded rows are dropped from the final mean.
    contrast = jnp.pad(contrast, ((0, n_pad - n), (0, d_pad - dim)))
    contrast_t = jnp.transpose(contrast)            # [Dp, Np] canonical MXU RHS

    lab = labels.reshape(-1).astype(jnp.int32)
    labels_tiled = jnp.tile(lab, n_views)                          # [n]
    # Positives per anchor (same label across all views, excluding self),
    # precomputed once here instead of a [TM, N] select + reduce per grid step.
    counts = jnp.sum(lab[:, None] == lab[None, :], axis=1)         # [bsz]
    num_pos = (n_views * counts - 1).astype(jnp.float32)
    num_pos = jnp.tile(num_pos, n_views)
    num_pos = jnp.pad(num_pos, (0, n_pad - n),
                      constant_values=1.0).reshape(n_pad, 1)

    labels_padded = jnp.pad(labels_tiled, (0, n_pad - n))
    lab_col = labels_padded.reshape(n_pad, 1)   # column block per row tile
    lab_row = labels_padded.reshape(1, n_pad)   # lane-dense row, resident

    feat_bytes = n_pad * d_pad * itemsize
    cost = pl.CostEstimate(
        flops=2 * n_pad * n_pad * d_pad + 8 * n_pad * n_pad,
        transcendentals=n_pad * n_pad + n_pad,
        bytes_accessed=2 * feat_bytes + 4 * n_pad * 4,
    )

    def build(lane_out, single_buffer):
        kernel = functools.partial(
            _supcon_kernel,
            inv_temperature=float(1.0 / temperature),
            loss_scale=float(temperature / base_temperature),
            n_valid=n,
            lane_out=lane_out,
        )
        resident_kw = dict(pipeline_mode=pl.Buffered(1)) if single_buffer else {}
        in_specs = [
            pl.BlockSpec((tm, d_pad), lambda i: (i, 0)),                    # anchor rows (streamed)
            pl.BlockSpec((d_pad, n_pad), lambda i: (0, 0), **resident_kw),  # contrast^T (resident)
            pl.BlockSpec((tm, 1), lambda i: (i, 0)),                        # labels, column block
            pl.BlockSpec((1, n_pad), lambda i: (0, 0), **resident_kw),      # labels, lane-dense row
            pl.BlockSpec((tm, 1), lambda i: (i, 0)),                        # num_pos, column block
        ]
        if lane_out:
            out_shape = jax.ShapeDtypeStruct((grid, 1, tm), jnp.float32)
            out_specs = pl.BlockSpec((1, 1, tm), lambda i: (i, 0, 0))
        else:
            out_shape = jax.ShapeDtypeStruct((n_pad, 1), jnp.float32)
            out_specs = pl.BlockSpec((tm, 1), lambda i: (i, 0))
        return pl.pallas_call(
            kernel,
            out_shape=out_shape,
            grid=(grid,),
            in_specs=in_specs,
            out_specs=out_specs,
            compiler_params=pltpu.CompilerParams(
                dimension_semantics=("parallel",),
                vmem_limit_bytes=int(vmem_budget),
            ),
            cost_estimate=cost,
        )

    args = (contrast, contrast_t, lab_col, lab_row, num_pos)
    try:
        per_anchor = build(lane_out=True, single_buffer=True)(*args)
    except Exception:
        # Conservative fallback (default double buffering, column-shaped output)
        # in case pipeline_mode / the lane-dense store reshape fails to lower.
        per_anchor = build(lane_out=False, single_buffer=False)(*args)

    # Mean over the real (unpadded) anchors; padded rows are dropped here.
    return jnp.mean(per_anchor.reshape(-1)[:n])


def _reference(features, labels, temperature=0.1, base_temperature=0.07):
    # Pure-JAX f32 reference mirroring the PyTorch forward.
    bsz, n_views, dim = features.shape
    n = bsz * n_views
    c = jnp.transpose(features, (1, 0, 2)).reshape(n, dim).astype(jnp.float32)
    adc = (c @ c.T) / temperature
    logits = adc - jnp.max(adc, axis=1, keepdims=True)
    lab = jnp.tile(labels.reshape(-1), n_views)
    mask = (lab[:, None] == lab[None, :]).astype(jnp.float32)
    logits_mask = 1.0 - jnp.eye(n, dtype=jnp.float32)
    mask = mask * logits_mask
    exp_logits = jnp.exp(logits) * logits_mask
    log_prob = logits - jnp.log(exp_logits.sum(1, keepdims=True))
    mean_log_prob_pos = (mask * log_prob).sum(1) / mask.sum(1)
    return jnp.mean(-(temperature / base_temperature) * mean_log_prob_pos)


if __name__ == "__main__":
    key = jax.random.PRNGKey(0)
    kf, kl = jax.random.split(key)

    # Small, deterministic shapes; n = 18 is not a multiple of the tile so the
    # row/column padding + masking path is exercised, and dim = 48 exercises
    # the lane-dim zero-padding.
    bsz, n_views, dim = 9, 2, 48
    features = jax.random.normal(kf, (bsz, n_views, dim), dtype=jnp.float32)
    # L2-normalize feature vectors (standard for SupCon inputs).
    features = features / jnp.linalg.norm(features, axis=-1, keepdims=True)
    labels = jax.random.randint(kl, (bsz,), 0, 3, dtype=jnp.int32)

    loss = jax.block_until_ready(supcon_loss(features, labels))
    ref = jax.block_until_ready(_reference(features, labels))

    assert jnp.allclose(loss, ref, atol=1e-4, rtol=1e-4), (loss, ref)
    print("KERNEL_OK")
</pallas_src>

<mosaic_0001>
module attributes {stable_mosaic.version = 11 : i64} {
  func.func @_supcon_kernel(%arg0: i32, %arg1: memref<8x128xf32, #tpu.memory_space<vmem>>, %arg2: memref<128x24xf32, #tpu.memory_space<vmem>>, %arg3: memref<8x1xi32, #tpu.memory_space<vmem>>, %arg4: memref<1x24xi32, #tpu.memory_space<vmem>>, %arg5: memref<8x1xf32, #tpu.memory_space<vmem>>, %arg6: memref<1x1x8xf32, #tpu.memory_space<vmem>>) attributes {dimension_semantics = [#tpu.dimension_semantics<parallel>], iteration_bounds = array<i64: 3>, scalar_prefetch = 0 : i64, scratch_operands = 0 : i64, tpu.core_type = #tpu.core_type<tc>, window_params = [{transform_indices = @transform_0, window_bounds = array<i64: 8, 128>}, {pipeline_mode = #tpu.pipeline_mode<synchronous>, transform_indices = @transform_1, window_bounds = array<i64: 128, 24>}, {transform_indices = @transform_2, window_bounds = array<i64: 8, 1>}, {pipeline_mode = #tpu.pipeline_mode<synchronous>, transform_indices = @transform_3, window_bounds = array<i64: 1, 24>}, {transform_indices = @transform_4, window_bounds = array<i64: 8, 1>}, {transform_indices = @transform_5, window_bounds = array<i64: 1, 1, 8>}]} {
    %c0 = arith.constant 0 : index
    %c0_0 = arith.constant 0 : index
    %0 = vector.load %arg1[%c0, %c0_0] : memref<8x128xf32, #tpu.memory_space<vmem>>, vector<8x128xf32>
    %cst = arith.constant 1.000000e+01 : f32
    %1 = vector.broadcast %cst : f32 to vector<8x128xf32>
    %2 = arith.mulf %0, %1 : vector<8x128xf32>
    %c0_1 = arith.constant 0 : index
    %c0_2 = arith.constant 0 : index
    %3 = vector.load %arg2[%c0_1, %c0_2] : memref<128x24xf32, #tpu.memory_space<vmem>>, vector<128x24xf32>
    %cst_3 = arith.constant dense<0.000000e+00> : vector<8x24xf32>
    %4 = tpu.matmul %2, %3, %cst_3 {dimension_numbers = #tpu.dot_dimension_numbers<[1], [0], [0], [1], [0, 0, 1, 1], [], []>} : vector<8x128xf32>, vector<128x24xf32>, vector<8x24xf32> -> vector<8x24xf32>
    %cst_4 = arith.constant dense<0xFF800000> : vector<8xf32>
    %5 = vector.multi_reduction <maximumf>, %4, %cst_4 [1] : vector<8x24xf32> to vector<8xf32>
    %6 = vector.shape_cast %5 : vector<8xf32> to vector<8x1xf32>
    %7 = vector.broadcast %6 : vector<8x1xf32> to vector<8x24xf32>
    %8 = arith.subf %4, %7 : vector<8x24xf32>
    %c8_i32 = arith.constant 8 : i32
    %9 = arith.muli %arg0, %c8_i32 : i32
    %10 = tpu.iota {dimensions = array<i32: 0>} : vector<8x1xi32>
    %11 = vector.broadcast %9 : i32 to vector<8x1xi32>
    %12 = arith.addi %11, %10 : vector<8x1xi32>
    %13 = tpu.iota {dimensions = array<i32: 1>} : vector<1x24xi32>
    %14 = vector.broadcast %12 : vector<8x1xi32> to vector<8x24xi32>
    %15 = vector.broadcast %13 : vector<1x24xi32> to vector<8x24xi32>
    %16 = arith.cmpi eq, %14, %15 : vector<8x24xi32>
    %c18_i32 = arith.constant 18 : i32
    %17 = vector.broadcast %c18_i32 : i32 to vector<1x24xi32>
    %18 = arith.cmpi sge, %13, %17 : vector<1x24xi32>
    %19 = vector.broadcast %18 : vector<1x24xi1> to vector<8x24xi1>
    %20 = arith.ori %16, %19 : vector<8x24xi1>
    %cst_5 = arith.constant 0xFF800000 : f32
    %21 = vector.broadcast %cst_5 : f32 to vector<8x24xf32>
    %22 = arith.select %20, %21, %8 : vector<8x24xi1>, vector<8x24xf32>
    %23 = math.exp %22 : vector<8x24xf32>
    %cst_6 = arith.constant dense<0.000000e+00> : vector<8xf32>
    %24 = vector.multi_reduction <add>, %23, %cst_6 [1] : vector<8x24xf32> to vector<8xf32>
    %25 = vector.shape_cast %24 : vector<8xf32> to vector<8x1xf32>
    %26 = math.log %25 : vector<8x1xf32>
    %c0_7 = arith.constant 0 : index
    %c0_8 = arith.constant 0 : index
    %27 = vector.load %arg3[%c0_7, %c0_8] : memref<8x1xi32, #tpu.memory_space<vmem>>, vector<8x1xi32>
    %c0_9 = arith.constant 0 : index
    %c0_10 = arith.constant 0 : index
    %28 = vector.load %arg4[%c0_9, %c0_10] : memref<1x24xi32, #tpu.memory_space<vmem>>, vector<1x24xi32>
    %29 = vector.broadcast %27 : vector<8x1xi32> to vector<8x24xi32>
    %30 = vector.broadcast %28 : vector<1x24xi32> to vector<8x24xi32>
    %31 = arith.cmpi eq, %29, %30 : vector<8x24xi32>
    %cst_11 = arith.constant dense<true> : vector<8x24xi1>
    %32 = arith.xori %20, %cst_11 : vector<8x24xi1>
    %33 = arith.andi %31, %32 : vector<8x24xi1>
    %cst_12 = arith.constant 0.000000e+00 : f32
    %34 = vector.broadcast %cst_12 : f32 to vector<8x24xf32>
    %35 = arith.select %33, %8, %34 : vector<8x24xi1>, vector<8x24xf32>
    %cst_13 = arith.constant dense<0.000000e+00> : vector<8xf32>
    %36 = vector.multi_reduction <add>, %35, %cst_13 [1] : vector<8x24xf32> to vector<8xf32>
    %37 = vector.shape_cast %36 : vector<8xf32> to vector<8x1xf32>
    %c0_14 = arith.constant 0 : index
    %c0_15 = arith.constant 0 : index
    %38 = vector.load %arg5[%c0_14, %c0_15] : memref<8x1xf32, #tpu.memory_space<vmem>>, vector<8x1xf32>
    %39 = arith.divf %37, %38 : vector<8x1xf32>
    %40 = arith.subf %39, %26 : vector<8x1xf32>
    %cst_16 = arith.constant -1.42857146 : f32
    %41 = vector.broadcast %cst_16 : f32 to vector<8x1xf32>
    %42 = arith.mulf %41, %40 : vector<8x1xf32>
    %43 = vector.shape_cast %42 : vector<8x1xf32> to vector<1x1x8xf32>
    %c0_17 = arith.constant 0 : index
    %c0_18 = arith.constant 0 : index
    %c0_19 = arith.constant 0 : index
    %44 = vector.load %arg6[%c0_17, %c0_18, %c0_19] : memref<1x1x8xf32, #tpu.memory_space<vmem>>, vector<1x1x8xf32>
    tpu.vector_store %arg6[%c0_17, %c0_18, %c0_19], %43 {strides = array<i32>} : memref<1x1x8xf32, #tpu.memory_space<vmem>>, vector<1x1x8xf32>,
    return
  }
  func.func @transform_0(%arg0: i32) -> (i32, i32) {
    %c0_i32 = arith.constant 0 : i32
    %c0_i32_0 = arith.constant 0 : i32
    return %arg0, %c0_i32 : i32, i32
  }
  func.func @transform_1(%arg0: i32) -> (i32, i32) {
    %c0_i32 = arith.constant 0 : i32
    %c0_i32_0 = arith.constant 0 : i32
    %c0_i32_1 = arith.constant 0 : i32
    return %c0_i32, %c0_i32_0 : i32, i32
  }
  func.func @transform_2(%arg0: i32) -> (i32, i32) {
    %c0_i32 = arith.constant 0 : i32
    %c0_i32_0 = arith.constant 0 : i32
    return %arg0, %c0_i32 : i32, i32
  }
  func.func @transform_3(%arg0: i32) -> (i32, i32) {
    %c0_i32 = arith.constant 0 : i32
    %c0_i32_0 = arith.constant 0 : i32
    %c0_i32_1 = arith.constant 0 : i32
    return %c0_i32, %c0_i32_0 : i32, i32
  }
  func.func @transform_4(%arg0: i32) -> (i32, i32) {
    %c0_i32 = arith.constant 0 : i32
    %c0_i32_0 = arith.constant 0 : i32
    return %arg0, %c0_i32 : i32, i32
  }
  func.func @transform_5(%arg0: i32) -> (i32, i32, i32) {
    %c0_i32 = arith.constant 0 : i32
    %c0_i32_0 = arith.constant 0 : i32
    %c0_i32_1 = arith.constant 0 : i32
    return %arg0, %c0_i32, %c0_i32_0 : i32, i32, i32
  }
}

module attributes {stable_mosaic.version = 11 : i64} {
  func.func @_supcon_kernel(%arg0: i32, %arg1: memref<8x128xf32, #tpu.memory_space<vmem>>, %arg2: memref<128x24xf32, #tpu.memory_space<vmem>>, %arg3: memref<8x1xi32, #tpu.memory_space<vmem>>, %arg4: memref<1x24xi32, #tpu.memory_space<vmem>>, %arg5: memref<8x1xf32, #tpu.memory_space<vmem>>, %arg6: memref<8x1xf32, #tpu.memory_space<vmem>>) attributes {dimension_semantics = [#tpu.dimension_semantics<parallel>], iteration_bounds = array<i64: 3>, scalar_prefetch = 0 : i64, scratch_operands = 0 : i64, tpu.core_type = #tpu.core_type<tc>, window_params = [{transform_indices = @transform_0, window_bounds = array<i64: 8, 128>}, {pipeline_mode = #tpu.pipeline_mode<synchronous>, transform_indices = @transform_1, window_bounds = array<i64: 128, 24>}, {transform_indices = @transform_2, window_bounds = array<i64: 8, 1>}, {pipeline_mode = #tpu.pipeline_mode<synchronous>, transform_indices = @transform_3, window_bounds = array<i64: 1, 24>}, {transform_indices = @transform_4, window_bounds = array<i64: 8, 1>}, {transform_indices = @transform_5, window_bounds = array<i64: 8, 1>}]} {
    %c0 = arith.constant 0 : index
    %c0_0 = arith.constant 0 : index
    %0 = vector.load %arg1[%c0, %c0_0] : memref<8x128xf32, #tpu.memory_space<vmem>>, vector<8x128xf32>
    %cst = arith.constant 1.000000e+01 : f32
    %1 = vector.broadcast %cst : f32 to vector<8x128xf32>
    %2 = arith.mulf %0, %1 : vector<8x128xf32>
    %c0_1 = arith.constant 0 : index
    %c0_2 = arith.constant 0 : index
    %3 = vector.load %arg2[%c0_1, %c0_2] : memref<128x24xf32, #tpu.memory_space<vmem>>, vector<128x24xf32>
    %cst_3 = arith.constant dense<0.000000e+00> : vector<8x24xf32>
    %4 = tpu.matmul %2, %3, %cst_3 {dimension_numbers = #tpu.dot_dimension_numbers<[1], [0], [0], [1], [0, 0, 1, 1], [], []>} : vector<8x128xf32>, vector<128x24xf32>, vector<8x24xf32> -> vector<8x24xf32>
    %cst_4 = arith.constant dense<0xFF800000> : vector<8xf32>
    %5 = vector.multi_reduction <maximumf>, %4, %cst_4 [1] : vector<8x24xf32> to vector<8xf32>
    %6 = vector.shape_cast %5 : vector<8xf32> to vector<8x1xf32>
    %7 = vector.broadcast %6 : vector<8x1xf32> to vector<8x24xf32>
    %8 = arith.subf %4, %7 : vector<8x24xf32>
    %c8_i32 = arith.constant 8 : i32
    %9 = arith.muli %arg0, %c8_i32 : i32
    %10 = tpu.iota {dimensions = array<i32: 0>} : vector<8x1xi32>
    %11 = vector.broadcast %9 : i32 to vector<8x1xi32>
    %12 = arith.addi %11, %10 : vector<8x1xi32>
    %13 = tpu.iota {dimensions = array<i32: 1>} : vector<1x24xi32>
    %14 = vector.broadcast %12 : vector<8x1xi32> to vector<8x24xi32>
    %15 = vector.broadcast %13 : vector<1x24xi32> to vector<8x24xi32>
    %16 = arith.cmpi eq, %14, %15 : vector<8x24xi32>
    %c18_i32 = arith.constant 18 : i32
    %17 = vector.broadcast %c18_i32 : i32 to vector<1x24xi32>
    %18 = arith.cmpi sge, %13, %17 : vector<1x24xi32>
    %19 = vector.broadcast %18 : vector<1x24xi1> to vector<8x24xi1>
    %20 = arith.ori %16, %19 : vector<8x24xi1>
    %cst_5 = arith.constant 0xFF800000 : f32
    %21 = vector.broadcast %cst_5 : f32 to vector<8x24xf32>
    %22 = arith.select %20, %21, %8 : vector<8x24xi1>, vector<8x24xf32>
    %23 = math.exp %22 : vector<8x24xf32>
    %cst_6 = arith.constant dense<0.000000e+00> : vector<8xf32>
    %24 = vector.multi_reduction <add>, %23, %cst_6 [1] : vector<8x24xf32> to vector<8xf32>
    %25 = vector.shape_cast %24 : vector<8xf32> to vector<8x1xf32>
    %26 = math.log %25 : vector<8x1xf32>
    %c0_7 = arith.constant 0 : index
    %c0_8 = arith.constant 0 : index
    %27 = vector.load %arg3[%c0_7, %c0_8] : memref<8x1xi32, #tpu.memory_space<vmem>>, vector<8x1xi32>
    %c0_9 = arith.constant 0 : index
    %c0_10 = arith.constant 0 : index
    %28 = vector.load %arg4[%c0_9, %c0_10] : memref<1x24xi32, #tpu.memory_space<vmem>>, vector<1x24xi32>
    %29 = vector.broadcast %27 : vector<8x1xi32> to vector<8x24xi32>
    %30 = vector.broadcast %28 : vector<1x24xi32> to vector<8x24xi32>
    %31 = arith.cmpi eq, %29, %30 : vector<8x24xi32>
    %cst_11 = arith.constant dense<true> : vector<8x24xi1>
    %32 = arith.xori %20, %cst_11 : vector<8x24xi1>
    %33 = arith.andi %31, %32 : vector<8x24xi1>
    %cst_12 = arith.constant 0.000000e+00 : f32
    %34 = vector.broadcast %cst_12 : f32 to vector<8x24xf32>
    %35 = arith.select %33, %8, %34 : vector<8x24xi1>, vector<8x24xf32>
    %cst_13 = arith.constant dense<0.000000e+00> : vector<8xf32>
    %36 = vector.multi_reduction <add>, %35, %cst_13 [1] : vector<8x24xf32> to vector<8xf32>
    %37 = vector.shape_cast %36 : vector<8xf32> to vector<8x1xf32>
    %c0_14 = arith.constant 0 : index
    %c0_15 = arith.constant 0 : index
    %38 = vector.load %arg5[%c0_14, %c0_15] : memref<8x1xf32, #tpu.memory_space<vmem>>, vector<8x1xf32>
    %39 = arith.divf %37, %38 : vector<8x1xf32>
    %40 = arith.subf %39, %26 : vector<8x1xf32>
    %cst_16 = arith.constant -1.42857146 : f32
    %41 = vector.broadcast %cst_16 : f32 to vector<8x1xf32>
    %42 = arith.mulf %41, %40 : vector<8x1xf32>
    %c0_17 = arith.constant 0 : index
    %c0_18 = arith.constant 0 : index
    %43 = vector.load %arg6[%c0_17, %c0_18] : memref<8x1xf32, #tpu.memory_space<vmem>>, vector<8x1xf32>
    tpu.vector_store %arg6[%c0_17, %c0_18], %42 {strides = array<i32>} : memref<8x1xf32, #tpu.memory_space<vmem>>, vector<8x1xf32>,
    return
  }
  func.func @transform_0(%arg0: i32) -> (i32, i32) {
    %c0_i32 = arith.constant 0 : i32
    %c0_i32_0 = arith.constant 0 : i32
    return %arg0, %c0_i32 : i32, i32
  }
  func.func @transform_1(%arg0: i32) -> (i32, i32) {
    %c0_i32 = arith.constant 0 : i32
    %c0_i32_0 = arith.constant 0 : i32
    %c0_i32_1 = arith.constant 0 : i32
    return %c0_i32, %c0_i32_0 : i32, i32
  }
  func.func @transform_2(%arg0: i32) -> (i32, i32) {
    %c0_i32 = arith.constant 0 : i32
    %c0_i32_0 = arith.constant 0 : i32
    return %arg0, %c0_i32 : i32, i32
  }
  func.func @transform_3(%arg0: i32) -> (i32, i32) {
    %c0_i32 = arith.constant 0 : i32
    %c0_i32_0 = arith.constant 0 : i32
    %c0_i32_1 = arith.constant 0 : i32
    return %c0_i32, %c0_i32_0 : i32, i32
  }
  func.func @transform_4(%arg0: i32) -> (i32, i32) {
    %c0_i32 = arith.constant 0 : i32
    %c0_i32_0 = arith.constant 0 : i32
    return %arg0, %c0_i32 : i32, i32
  }
  func.func @transform_5(%arg0: i32) -> (i32, i32) {
    %c0_i32 = arith.constant 0 : i32
    %c0_i32_0 = arith.constant 0 : i32
    return %arg0, %c0_i32 : i32, i32
  }
}

</mosaic_0001>

<llo_original>
// kernel: tpu_custom_call.1
$region0: #{tpu_custom_call.1}
  #allocation0 [shape = 'u32[]', space=smem, size = 0x4, offset = 0x4, fixed_abs, tag = 'smem constant byte address 0x4 - core index']
  #allocation1 [shape = 'u32[72,128]{1,0:T(1,128)}', space=vmem, size = 0x9000, scoped, tag = 'internal scratch']
  %s0 = inlined_call_operand.vmem [shape: f32[24,128], index: 0, kind: input, shape index: {}]
  %s1 = inlined_call_operand.vmem [shape: f32[128,24], index: 1, kind: input, shape index: {}]
  %s2 = inlined_call_operand.vmem [shape: s32[24,1], index: 2, kind: input, shape index: {}]
  %s3 = inlined_call_operand.vmem [shape: s32[1,24], index: 3, kind: input, shape index: {}]
  %s4 = inlined_call_operand.vmem [shape: f32[24,1], index: 4, kind: input, shape index: {}]
  %s5 = inlined_call_operand.hbm [shape: f32[3,1,8], index: 5, kind: output, shape index: {}]
  %s6 = sld [smem:[#allocation0]]
  $region53: #{tpu_custom_call.1} parent=0
    _
  %s8 = ssub.s32 1, %s6
  %s9 = scalar_select 0, %s8, %s6
  $region1: #{tpu_custom_call.1} parent=0
    #allocation2 [shape = 'u8[1024]{0}', space=vmem, size = 0x400, scoped, tag = 'output window, operand 0']
    #allocation3 [shape = 's32[2]{0}', space=sflag, size = 0x8, scoped, tag = 'scoped memory for tpu_custom_call.1']
    %10 = vsyncpa [#allocation3], 0
    %s11 = scalar_lea.sflag [#allocation3], 1
    %12 = vsyncpa %s11, 0
    loop: start=0, step=1, limit=5
    $region2: #{tpu_custom_call.1} parent=1 // loop_pre_header
      _
    $region3: #{tpu_custom_call.1} parent=1 // loop_header
      %s14 = sphi 0, %s18
      %p15 = scmp.ge.s32.totalorder %s14, 5
      %s24 = sphi 0, %s26
      %s27 = sphi 0, %s24
      %s28 = sphi 0, %s27
      %s44 = sphi 0, %s28
      %s48 = sphi 0, %s48
      %s50 = sphi 0, %s48
      %s51 = sphi 0, %s50
      %s65 = sphi 0, %s51
      %s71 = sphi 0, %s73
      %s74 = sphi 0, %s71
      %s75 = sphi 0, %s74
      %s91 = sphi 0, %s75
      %s95 = sphi 0, %s95
      %s97 = sphi 0, %s95
      %s98 = sphi 0, %s97
      %s112 = sphi 0, %s98
      %s118 = sphi 0, %s120
      %s121 = sphi 0, %s118
      %s122 = sphi 0, %s121
      %s138 = sphi 0, %s122
      %s144 = sphi 0, %s146
      %s147 = sphi 0, %s144
      %s148 = sphi 0, %s147
      %s164 = sphi 0, %s148
    $region4: #{tpu_custom_call.1} parent=1 // loop_header_branch
      %17 = sbr.rel (%p15) target = $region8
    $region5: #{tpu_custom_call.1} parent=1 // loop_body
      %s19 = ssub.s32 %s14, 1
      %s20 = ssub.s32 %s14, 2
      %s21 = sadd.s32 %s14, 1
      %s22 = ssub.s32 %s14, %s21
      %p23 = scmp.eq.s32.totalorder %s22, 0
      %s25 = sadd.s32 %s24, 1
      %s26 = scalar_select %p23, %s24, %s25
      %p29 = pneg %p23
      %p30 = scmp.eq.s32.totalorder %s14, 2
      %p31 = por %p29, %p30
      %p32 = scmp.ne.s32.totalorder %s24, %s27
      %p33 = scmp.eq.s32.totalorder %s14, 0
      %p34 = por %p32, %p33
      %p35 = scmp.ne.s32.totalorder %s24, %s27
      %p36 = scmp.eq.s32.totalorder %s19, 2
      %p37 = por %p35, %p36
      %p38 = scmp.ne.s32.totalorder %s27, %s28
      %p39 = scmp.eq.s32.totalorder %s19, 0
      %p40 = por %p38, %p39
      %p41 = scmp.ne.s32.totalorder %s27, %s28
      %p42 = scmp.eq.s32.totalorder %s20, 2
      %p43 = por %p41, %p42
      %p45 = scmp.ne.s32.totalorder %s28, %s44
      %p46 = scmp.eq.s32.totalorder %s20, 0
      %p47 = por %p45, %p46
      %s49 = sadd.s32 %s48, 1
      %p52 = scmp.eq.s32.totalorder %s14, 2
      %p53 = scmp.ne.s32.totalorder %s48, %s50
      %p54 = scmp.eq.s32.totalorder %s14, 0
      %p55 = por %p53, %p54
      %p56 = scmp.ne.s32.totalorder %s48, %s50
      %p57 = scmp.eq.s32.totalorder %s19, 2
      %p58 = por %p56, %p57
      %p59 = scmp.ne.s32.totalorder %s50, %s51
      %p60 = scmp.eq.s32.totalorder %s19, 0
      %p61 = por %p59, %p60
      %p62 = scmp.ne.s32.totalorder %s50, %s51
      %p63 = scmp.eq.s32.totalorder %s20, 2
      %p64 = por %p62, %p63
      %p66 = scmp.ne.s32.totalorder %s51, %s65
      %p67 = scmp.eq.s32.totalorder %s20, 0
      %p68 = por %p66, %p67
      %s69 = ssub.s32 %s14, %s21
      %p70 = scmp.eq.s32.totalorder %s69, 0
      %s72 = sadd.s32 %s71, 1
      %s73 = scalar_select %p70, %s71, %s72
      %p76 = pneg %p70
      %p77 = scmp.eq.s32.totalorder %s14, 2
      %p78 = por %p76, %p77
      %p79 = scmp.ne.s32.totalorder %s71, %s74
      %p80 = scmp.eq.s32.totalorder %s14, 0
      %p81 = por %p79, %p80
      %p82 = scmp.ne.s32.totalorder %s71, %s74
      %p83 = scmp.eq.s32.totalorder %s19, 2
      %p84 = por %p82, %p83
      %p85 = scmp.ne.s32.totalorder %s74, %s75
      %p86 = scmp.eq.s32.totalorder %s19, 0
      %p87 = por %p85, %p86
      %p88 = scmp.ne.s32.totalorder %s74, %s75
      %p89 = scmp.eq.s32.totalorder %s20, 2
      %p90 = por %p88, %p89
      %p92 = scmp.ne.s32.totalorder %s75, %s91
      %p93 = scmp.eq.s32.totalorder %s20, 0
      %p94 = por %p92, %p93
      %s96 = sadd.s32 %s95, 1
      %p99 = scmp.eq.s32.totalorder %s14, 2
      %p100 = scmp.ne.s32.totalorder %s95, %s97
      %p101 = scmp.eq.s32.totalorder %s14, 0
      %p102 = por %p100, %p101
      %p103 = scmp.ne.s32.totalorder %s95, %s97
      %p104 = scmp.eq.s32.totalorder %s19, 2
      %p105 = por %p103, %p104
      %p106 = scmp.ne.s32.totalorder %s97, %s98
      %p107 = scmp.eq.s32.totalorder %s19, 0
      %p108 = por %p106, %p107
      %p109 = scmp.ne.s32.totalorder %s97, %s98
      %p110 = scmp.eq.s32.totalorder %s20, 2
      %p111 = por %p109, %p110
      %p113 = scmp.ne.s32.totalorder %s98, %s112
      %p114 = scmp.eq.s32.totalorder %s20, 0
      %p115 = por %p113, %p114
      %s116 = ssub.s32 %s14, %s21
      %p117 = scmp.eq.s32.totalorder %s116, 0
      %s119 = sadd.s32 %s118, 1
      %s120 = scalar_select %p117, %s118, %s119
      %p123 = pneg %p117
      %p124 = scmp.eq.s32.totalorder %s14, 2
      %p125 = por %p123, %p124
      %p126 = scmp.ne.s32.totalorder %s118, %s121
      %p127 = scmp.eq.s32.totalorder %s14, 0
      %p128 = por %p126, %p127
      %p129 = scmp.ne.s32.totalorder %s118, %s121
      %p130 = scmp.eq.s32.totalorder %s19, 2
      %p131 = por %p129, %p130
      %p132 = scmp.ne.s32.totalorder %s121, %s122
      %p133 = scmp.eq.s32.totalorder %s19, 0
      %p134 = por %p132, %p133
      %p135 = scmp.ne.s32.totalorder %s121, %s122
      %p136 = scmp.eq.s32.totalorder %s20, 2
      %p137 = por %p135, %p136
      %p139 = scmp.ne.s32.totalorder %s122, %s138
      %p140 = scmp.eq.s32.totalorder %s20, 0
      %p141 = por %p139, %p140
      %s142 = ssub.s32 %s14, %s21
      %p143 = scmp.eq.s32.totalorder %s142, 0
      %s145 = sadd.s32 %s144, 1
      %s146 = scalar_select %p143, %s144, %s145
      %p149 = pneg %p143
      %p150 = scmp.eq.s32.totalorder %s14, 2
      %p151 = por %p149, %p150
      %p152 = scmp.ne.s32.totalorder %s144, %s147
      %p153 = scmp.eq.s32.totalorder %s14, 0
      %p154 = por %p152, %p153
      %p155 = scmp.ne.s32.totalorder %s144, %s147
      %p156 = scmp.eq.s32.totalorder %s19, 2
      %p157 = por %p155, %p156
      %p158 = scmp.ne.s32.totalorder %s147, %s148
      %p159 = scmp.eq.s32.totalorder %s19, 0
      %p160 = por %p158, %p159
      %p161 = scmp.ne.s32.totalorder %s147, %s148
      %p162 = scmp.eq.s32.totalorder %s20, 2
      %p163 = por %p161, %p162
      %p165 = scmp.ne.s32.totalorder %s148, %s164
      %p166 = scmp.eq.s32.totalorder %s20, 0
      %p167 = por %p165, %p166
      %p168 = scmp.le.s32.totalorder 1, %s14
      %p169 = scmp.lt.s32.totalorder %s14, 4
      %p170 = pnand %p168, %p169
      %p171 = pneg %p170
      // Predicated region
      $region9: #{tpu_custom_call.1} parent=5 // pred_check
        _
      $region10: #{tpu_custom_call.1} parent=5 // pred_check_branch
        %173 = sbr.rel (%p170) target = $region12
      $region11: #{tpu_custom_call.1} parent=5 // pred_region
        %s174 = ssub.s32 %s14, 1
        // Predicated region
        $region13: #{tpu_custom_call.1} parent=11 // pred_check
          %p175 = pneg %p61
        $region14: #{tpu_custom_call.1} parent=11 // pred_check_branch
          %177 = sbr.rel (%p175) target = $region16
        $region15: #{tpu_custom_call.1} parent=11 // pred_region
          _
        $region16: #{tpu_custom_call.1} parent=11 // pred_fallthru
          _
        // Predicated region
        $region17: #{tpu_custom_call.1} parent=11 // pred_check
          %p178 = pneg %p108
        $region18: #{tpu_custom_call.1} parent=11 // pred_check_branch
          %180 = sbr.rel (%p178) target = $region20
        $region19: #{tpu_custom_call.1} parent=11 // pred_region
          _
        $region20: #{tpu_custom_call.1} parent=11 // pred_fallthru
          _
      $region12: #{tpu_custom_call.1} parent=5 // pred_fallthru
        _
      %p181 = scmp.lt.s32.totalorder %s14, 3
      // Predicated region
      $region21: #{tpu_custom_call.1} parent=5 // pred_check
        %p182 = pneg %p181
      $region22: #{tpu_custom_call.1} parent=5 // pred_check_branch
        %184 = sbr.rel (%p182) target = $region24
      $region23: #{tpu_custom_call.1} parent=5 // pred_region
        // Predicated region
        $region25: #{tpu_custom_call.1} parent=23 // pred_check
          %p185 = pneg %p34
        $region26: #{tpu_custom_call.1} parent=23 // pred_check_branch
          %187 = sbr.rel (%p185) target = $region28
        $region27: #{tpu_custom_call.1} parent=23 // pred_region
          %p188 = scmp.lt.s32.totalorder %s14, 2
          %s189 = scalar_select %p188, %s14, 2
          %s190 = smul.addr %s189, 8
          %s191 = scalar_lea.vmem %s0, %s190
        $region28: #{tpu_custom_call.1} parent=23 // pred_fallthru
          _
        // Predicated region
        $region29: #{tpu_custom_call.1} parent=23 // pred_check
          %p192 = pneg %p81
        $region30: #{tpu_custom_call.1} parent=23 // pred_check_branch
          %194 = sbr.rel (%p192) target = $region32
        $region31: #{tpu_custom_call.1} parent=23 // pred_region
          %p195 = scmp.lt.s32.totalorder %s14, 2
          %s196 = scalar_select %p195, %s14, 2
          %s197 = smul.addr %s196, 8
          %s198 = scalar_lea.vmem %s2, %s197
        $region32: #{tpu_custom_call.1} parent=23 // pred_fallthru
          _
        // Predicated region
        $region33: #{tpu_custom_call.1} parent=23 // pred_check
          %p199 = pneg %p128
        $region34: #{tpu_custom_call.1} parent=23 // pred_check_branch
          %201 = sbr.rel (%p199) target = $region36
        $region35: #{tpu_custom_call.1} parent=23 // pred_region
          %p202 = scmp.lt.s32.totalorder %s14, 2
          %s203 = scalar_select %p202, %s14, 2
          %s204 = smul.addr %s203, 8
          %s205 = scalar_lea.vmem %s4, %s204
        $region36: #{tpu_custom_call.1} parent=23 // pred_fallthru
          _
      $region24: #{tpu_custom_call.1} parent=5 // pred_fallthru
        _
      %p206 = scmp.le.s32.totalorder 1, %s14
      %p207 = scmp.lt.s32.totalorder %s14, 4
      %p208 = pnand %p206, %p207
      %p209 = pneg %p208
      // Predicated region
      $region37: #{tpu_custom_call.1} parent=5 // pred_check
        _
      $region38: #{tpu_custom_call.1} parent=5 // pred_check_branch
        %211 = sbr.rel (%p208) target = $region40
      $region39: #{tpu_custom_call.1} parent=5 // pred_region
        %s212 = ssub.s32 %s14, 1
        %p213 = scmp.lt.s32.totalorder %s19, 2
        %s214 = scalar_select %p213, %s19, 2
        %s215 = smul.addr %s214, 8
        %s216 = scalar_lea.vmem %s0, %s215
        %p217 = pneg %p40
        %p218 = pneg %p37
        %p219 = pneg %p61
        %p220 = pneg %p58
        %p221 = scmp.lt.s32.totalorder %s19, 2
        %s222 = scalar_select %p221, %s19, 2
        %s223 = smul.addr %s222, 8
        %s224 = scalar_lea.vmem %s2, %s223
        %p225 = pneg %p87
        %p226 = pneg %p84
        %p227 = pneg %p108
        %p228 = pneg %p105
        %p229 = scmp.lt.s32.totalorder %s19, 2
        %s230 = scalar_select %p229, %s19, 2
        %s231 = smul.addr %s230, 8
        %s232 = scalar_lea.vmem %s4, %s231
        %p233 = pneg %p134
        %p234 = pneg %p131
        %p235 = pneg %p160
        %p236 = pneg %p157
        %s237 = sand.u32 %s147, 1
        %s238 = scalar_lea.sflag [#allocation3], %s237
        %s239 = sand.u32 %s147, 1
        %s240 = scalar_lea.vmem [#allocation2], %s239
        %p241 = scmp.lt.s32.totalorder %s19, 2
        %s242 = scalar_select %p241, %s19, 2
        %s243 = smul.addr %s242, 8
        %s244 = scalar_lea.vmem %s0, %s243
        %p245 = scmp.lt.s32.totalorder %s19, 2
        %s246 = scalar_select %p245, %s19, 2
        %s247 = smul.addr %s246, 8
        %s248 = scalar_lea.vmem %s2, %s247
        %p249 = scmp.lt.s32.totalorder %s19, 2
        %s250 = scalar_select %p249, %s19, 2
        %s251 = smul.addr %s250, 8
        %s252 = scalar_lea.vmem %s4, %s251
        %v253 = vld [vmem:[%s244] sm:$0xff]
        %v254 = vmul.f32 %v253, 10.0
        %v255 = vld [vmem:[%s1] sm:$0xff]
        %v256 = vld [vmem:[%s1 + $0x8] sm:$0xff]
        %v257 = vld [vmem:[%s1 + $0x10] sm:$0xff]
        %v258 = vld [vmem:[%s1 + $0x18] sm:$0xff]
        %v259 = vld [vmem:[%s1 + $0x20] sm:$0xff]
        %v260 = vld [vmem:[%s1 + $0x28] sm:$0xff]
        %v261 = vld [vmem:[%s1 + $0x30] sm:$0xff]
        %v262 = vld [vmem:[%s1 + $0x38] sm:$0xff]
        %v263 = vld [vmem:[%s1 + $0x40] sm:$0xff]
        %v264 = vld [vmem:[%s1 + $0x48] sm:$0xff]
        %v265 = vld [vmem:[%s1 + $0x50] sm:$0xff]
        %v266 = vld [vmem:[%s1 + $0x58] sm:$0xff]
        %v267 = vld [vmem:[%s1 + $0x60] sm:$0xff]
        %v268 = vld [vmem:[%s1 + $0x68] sm:$0xff]
        %v269 = vld [vmem:[%s1 + $0x70] sm:$0xff]
        %v270 = vld [vmem:[%s1 + $0x78] sm:$0xff]
        %271 = vmatpush.msra.mxu0 %v270
        %272 = vmatpush.msra.mxu0 %v269
        %273 = vmatpush.msra.mxu0 %v268
        %274 = vmatpush.msra.mxu0 %v267
        %275 = vmatpush.msra.mxu0 %v266
        %276 = vmatpush.msra.mxu0 %v265
        %277 = vmatpush.msra.mxu0 %v264
        %278 = vmatpush.msra.mxu0 %v263
        %279 = vmatpush.msra.mxu0 %v262
        %280 = vmatpush.msra.mxu0 %v261
        %281 = vmatpush.msra.mxu0 %v260
        %282 = vmatpush.msra.mxu0 %v259
        %283 = vmatpush.msra.mxu0 %v258
        %284 = vmatpush.msra.mxu0 %v257
        %285 = vmatpush.msra.mxu0 %v256
        %286 = vmatpush.msra.mxu0 %v255
        %287 = vmatmul.f32.gmra.mxu0 %v254
        %v288 = vpop.f32.mrf.mxu0
        %v289 = vadd.f32 0.0, %v288
        %290 = vdwg.mxu0
        %vm291 = vcmask 195584
        %v292 = vsel %vm291, %v289, -inf
        %293 = vmax.xlane.f32.xlu0 %v292
        %v294 = vpop.xlane.xlu0 %293
        %v295 = vsub.f32 %v289, %v294
        %s296 = smul.u32 %s19, 8
        %v297 = vlaneseq
        %v298 = vshrl.u32 %v297, 7
        %v299 = vstv %s296
        %v300 = vadd.s32 %v299, %v298
        %v301 = vlaneseq
        %v302 = vand.u32 %v301, 127
        %vm303 = vcmp.eq.s32.totalorder %v300, %v302
        %vm304 = vcmp.ge.s32.totalorder %v302, 18
        %v305 = vsel %vm304, 1, 0
        %vm306 = vcmp.eq.s32.totalorder %v305, 1
        %vm307 = vmor %vm303, %vm306
        %v308 = vsel %vm307, -inf, %v295
        %v309 = vmul.f32 %v308, 1.442695
        %v310 = vpow.pop %v309
        %v311 = vsel %vm291, %v310, 0.0
        %312 = vadd.xlane.f32.xlu0 %v311
        %v313 = vpop.xlane.xlu0 %312
        %v314 = vlog2.pop %v313
        %v315 = vmul.f32 %v314, 0.6931472
        %v316 = vld [vmem:[%s248] sm:$0xff]
        %v317 = vld [vmem:[%s3] sm:$0x1]
        %318 = vset.pattern.permute.xlu0 0
        %319 = vperm.xlu0 %318, %v316
        %v320 = vpop.permute.xlu0 %319
        %v321 = vperm.slane %v317, 0
        %vm322 = vcmp.eq.s32.totalorder %v320, %v321
        %vm323 = vmxor %vm307, 1
        %vm324 = vmand %vm322, %vm323
        %v325 = vsel %vm324, %v295, 0.0
        %v326 = vsel %vm291, %v325, 0.0
        %327 = vadd.xlane.f32.xlu0 %v326
        %v328 = vpop.xlane.xlu0 %327
        %v329 = vld [vmem:[%s252] sm:$0xff]
        %v330 = vrcp.pop %v329
        %v331 = vmul.f32 %v329, %v330
        %v332 = vsub.f32 1.0, %v331
        %v333 = vmul.f32 %v330, %v332
        %v334 = vadd.f32 %v330, %v333
        %vm335 = vweird.f32 %v329
        %vm336 = vweird.f32 %v330
        %vm337 = vmor %vm335, %vm336
        %v338 = vsel %vm337, %v330, %v334
        %v339 = vand.u32 2147483647, %v329
        %vm340 = vcmp.eq.f32.partialorder %v339, 8.507059e+37
        %v341 = vand.u32 %v329, 2147483648
        %v342 = vor.u32 1.1754944e-38, %v341
        %v343 = vsel %vm340, %v342, %v338
        %v344 = vmul.f32 %v328, %v343
        %v345 = vsub.f32 %v344, %v315
        %v346 = vmul.f32 %v345, -1.4285715
        %348 = vset.pattern.permute.xlu0 0
        %349 = vperm.xlu0 %348, %v346
        %v350 = vpop.permute.xlu0 %349
        %v351 = vperm.slane %v350, %v302
        %vm353 = vcmask 57344
        %354 = vst.msk [vmem:[%s240] sm:$0x1] %vm353, %v351
        %s355 = sand.u32 %s147, 1
        %s356 = scalar_lea.sflag [#allocation3], %s355
        %s357 = sand.u32 %s147, 1
        %s358 = scalar_lea.vmem [#allocation2], %s357
        // Predicated region
        $region41: #{tpu_custom_call.1} parent=39 // pred_check
          %p359 = pneg %p157
        $region42: #{tpu_custom_call.1} parent=39 // pred_check_branch
          %361 = sbr.rel (%p359) target = $region44
        $region43: #{tpu_custom_call.1} parent=39 // pred_region
          %363 = vsyncadd %s356, 0
          %s364 = scalar_lea.hbm %s5, %s19
          %s366 = sshll.u32 %s358, 4
          %s367 = int_to_ptr.vmem [resolvable:$true] %s366
          %s368 = sshll.u32 %s364, 4
          %s369 = int_to_ptr.hbm [resolvable:$true] %s368
          %371 = dma.vmem_to_hbm [thread:$0]  %s367, 16, %s369, %s356
        $region44: #{tpu_custom_call.1} parent=39 // pred_fallthru
          _
      $region40: #{tpu_custom_call.1} parent=5 // pred_fallthru
        _
      %p372 = scmp.le.s32.totalorder 2, %s14
      // Predicated region
      $region45: #{tpu_custom_call.1} parent=5 // pred_check
        %p373 = pneg %p372
      $region46: #{tpu_custom_call.1} parent=5 // pred_check_branch
        %375 = sbr.rel (%p373) target = $region48
      $region47: #{tpu_custom_call.1} parent=5 // pred_region
        %s376 = ssub.s32 %s14, 2
        // Predicated region
        $region49: #{tpu_custom_call.1} parent=47 // pred_check
          %p377 = pneg %p163
        $region50: #{tpu_custom_call.1} parent=47 // pred_check_branch
          %379 = sbr.rel (%p377) target = $region52
        $region51: #{tpu_custom_call.1} parent=47 // pred_region
          %s380 = sand.u32 %s148, 1
          %s381 = scalar_lea.sflag [#allocation3], %s380
          %s382 = sand.u32 %s148, 1
          %s383 = scalar_lea.vmem [#allocation2], %s382
          %385 = dma.done %s381, 16
        $region52: #{tpu_custom_call.1} parent=47 // pred_fallthru
          _
      $region48: #{tpu_custom_call.1} parent=5 // pred_fallthru
        _
    $region6: #{tpu_custom_call.1} parent=1 // loop_footer
      %s18 = sadd.s32 1, %s14
    $region7: #{tpu_custom_call.1} parent=1 // loop_footer_branch
      %13 = sbr.rel target = $region3
    $region8: #{tpu_custom_call.1} parent=1 // loop_exit
      _
    %386 = vsyncpa [#allocation3], 1
    %s387 = scalar_lea.sflag [#allocation3], 1
    %388 = vsyncpa %s387, 1

// kernel: tpu_custom_call.1
$region0: #{tpu_custom_call.1}
  #allocation0 [shape = 'u32[]', space=smem, size = 0x4, offset = 0x4, fixed_abs, tag = 'smem constant byte address 0x4 - core index']
  #allocation1 [shape = 'u32[72,128]{1,0:T(1,128)}', space=vmem, size = 0x9000, scoped, tag = 'internal scratch']
  %s0 = inlined_call_operand.vmem [shape: f32[24,128], index: 0, kind: input, shape index: {}]
  %s1 = inlined_call_operand.vmem [shape: f32[128,24], index: 1, kind: input, shape index: {}]
  %s2 = inlined_call_operand.vmem [shape: s32[24,1], index: 2, kind: input, shape index: {}]
  %s3 = inlined_call_operand.vmem [shape: s32[1,24], index: 3, kind: input, shape index: {}]
  %s4 = inlined_call_operand.vmem [shape: f32[24,1], index: 4, kind: input, shape index: {}]
  %s5 = inlined_call_operand.vmem [shape: f32[24,1], index: 5, kind: output, shape index: {}]
  %s6 = sld [smem:[#allocation0]]
  $region53: #{tpu_custom_call.1} parent=0
    _
  %s8 = ssub.s32 1, %s6
  %s9 = scalar_select 0, %s8, %s6
  loop: start=0, step=1, limit=5
  $region2: #{tpu_custom_call.1} parent=0 // loop_pre_header
    _
  $region3: #{tpu_custom_call.1} parent=0 // loop_header
    %s11 = sphi 0, %s15
    %p12 = scmp.ge.s32.totalorder %s11, 5
    %s21 = sphi 0, %s23
    %s24 = sphi 0, %s21
    %s25 = sphi 0, %s24
    %s41 = sphi 0, %s25
    %s45 = sphi 0, %s45
    %s47 = sphi 0, %s45
    %s48 = sphi 0, %s47
    %s62 = sphi 0, %s48
    %s68 = sphi 0, %s70
    %s71 = sphi 0, %s68
    %s72 = sphi 0, %s71
    %s88 = sphi 0, %s72
    %s92 = sphi 0, %s92
    %s94 = sphi 0, %s92
    %s95 = sphi 0, %s94
    %s109 = sphi 0, %s95
    %s115 = sphi 0, %s117
    %s118 = sphi 0, %s115
    %s119 = sphi 0, %s118
    %s135 = sphi 0, %s119
    %s141 = sphi 0, %s143
    %s144 = sphi 0, %s141
    %s145 = sphi 0, %s144
    %s161 = sphi 0, %s145
  $region4: #{tpu_custom_call.1} parent=0 // loop_header_branch
    %14 = sbr.rel (%p12) target = $region8
  $region5: #{tpu_custom_call.1} parent=0 // loop_body
    %s16 = ssub.s32 %s11, 1
    %s17 = ssub.s32 %s11, 2
    %s18 = sadd.s32 %s11, 1
    %s19 = ssub.s32 %s11, %s18
    %p20 = scmp.eq.s32.totalorder %s19, 0
    %s22 = sadd.s32 %s21, 1
    %s23 = scalar_select %p20, %s21, %s22
    %p26 = pneg %p20
    %p27 = scmp.eq.s32.totalorder %s11, 2
    %p28 = por %p26, %p27
    %p29 = scmp.ne.s32.totalorder %s21, %s24
    %p30 = scmp.eq.s32.totalorder %s11, 0
    %p31 = por %p29, %p30
    %p32 = scmp.ne.s32.totalorder %s21, %s24
    %p33 = scmp.eq.s32.totalorder %s16, 2
    %p34 = por %p32, %p33
    %p35 = scmp.ne.s32.totalorder %s24, %s25
    %p36 = scmp.eq.s32.totalorder %s16, 0
    %p37 = por %p35, %p36
    %p38 = scmp.ne.s32.totalorder %s24, %s25
    %p39 = scmp.eq.s32.totalorder %s17, 2
    %p40 = por %p38, %p39
    %p42 = scmp.ne.s32.totalorder %s25, %s41
    %p43 = scmp.eq.s32.totalorder %s17, 0
    %p44 = por %p42, %p43
    %s46 = sadd.s32 %s45, 1
    %p49 = scmp.eq.s32.totalorder %s11, 2
    %p50 = scmp.ne.s32.totalorder %s45, %s47
    %p51 = scmp.eq.s32.totalorder %s11, 0
    %p52 = por %p50, %p51
    %p53 = scmp.ne.s32.totalorder %s45, %s47
    %p54 = scmp.eq.s32.totalorder %s16, 2
    %p55 = por %p53, %p54
    %p56 = scmp.ne.s32.totalorder %s47, %s48
    %p57 = scmp.eq.s32.totalorder %s16, 0
    %p58 = por %p56, %p57
    %p59 = scmp.ne.s32.totalorder %s47, %s48
    %p60 = scmp.eq.s32.totalorder %s17, 2
    %p61 = por %p59, %p60
    %p63 = scmp.ne.s32.totalorder %s48, %s62
    %p64 = scmp.eq.s32.totalorder %s17, 0
    %p65 = por %p63, %p64
    %s66 = ssub.s32 %s11, %s18
    %p67 = scmp.eq.s32.totalorder %s66, 0
    %s69 = sadd.s32 %s68, 1
    %s70 = scalar_select %p67, %s68, %s69
    %p73 = pneg %p67
    %p74 = scmp.eq.s32.totalorder %s11, 2
    %p75 = por %p73, %p74
    %p76 = scmp.ne.s32.totalorder %s68, %s71
    %p77 = scmp.eq.s32.totalorder %s11, 0
    %p78 = por %p76, %p77
    %p79 = scmp.ne.s32.totalorder %s68, %s71
    %p80 = scmp.eq.s32.totalorder %s16, 2
    %p81 = por %p79, %p80
    %p82 = scmp.ne.s32.totalorder %s71, %s72
    %p83 = scmp.eq.s32.totalorder %s16, 0
    %p84 = por %p82, %p83
    %p85 = scmp.ne.s32.totalorder %s71, %s72
    %p86 = scmp.eq.s32.totalorder %s17, 2
    %p87 = por %p85, %p86
    %p89 = scmp.ne.s32.totalorder %s72, %s88
    %p90 = scmp.eq.s32.totalorder %s17, 0
    %p91 = por %p89, %p90
    %s93 = sadd.s32 %s92, 1
    %p96 = scmp.eq.s32.totalorder %s11, 2
    %p97 = scmp.ne.s32.totalorder %s92, %s94
    %p98 = scmp.eq.s32.totalorder %s11, 0
    %p99 = por %p97, %p98
    %p100 = scmp.ne.s32.totalorder %s92, %s94
    %p101 = scmp.eq.s32.totalorder %s16, 2
    %p102 = por %p100, %p101
    %p103 = scmp.ne.s32.totalorder %s94, %s95
    %p104 = scmp.eq.s32.totalorder %s16, 0
    %p105 = por %p103, %p104
    %p106 = scmp.ne.s32.totalorder %s94, %s95
    %p107 = scmp.eq.s32.totalorder %s17, 2
    %p108 = por %p106, %p107
    %p110 = scmp.ne.s32.totalorder %s95, %s109
    %p111 = scmp.eq.s32.totalorder %s17, 0
    %p112 = por %p110, %p111
    %s113 = ssub.s32 %s11, %s18
    %p114 = scmp.eq.s32.totalorder %s113, 0
    %s116 = sadd.s32 %s115, 1
    %s117 = scalar_select %p114, %s115, %s116
    %p120 = pneg %p114
    %p121 = scmp.eq.s32.totalorder %s11, 2
    %p122 = por %p120, %p121
    %p123 = scmp.ne.s32.totalorder %s115, %s118
    %p124 = scmp.eq.s32.totalorder %s11, 0
    %p125 = por %p123, %p124
    %p126 = scmp.ne.s32.totalorder %s115, %s118
    %p127 = scmp.eq.s32.totalorder %s16, 2
    %p128 = por %p126, %p127
    %p129 = scmp.ne.s32.totalorder %s118, %s119
    %p130 = scmp.eq.s32.totalorder %s16, 0
    %p131 = por %p129, %p130
    %p132 = scmp.ne.s32.totalorder %s118, %s119
    %p133 = scmp.eq.s32.totalorder %s17, 2
    %p134 = por %p132, %p133
    %p136 = scmp.ne.s32.totalorder %s119, %s135
    %p137 = scmp.eq.s32.totalorder %s17, 0
    %p138 = por %p136, %p137
    %s139 = ssub.s32 %s11, %s18
    %p140 = scmp.eq.s32.totalorder %s139, 0
    %s142 = sadd.s32 %s141, 1
    %s143 = scalar_select %p140, %s141, %s142
    %p146 = pneg %p140
    %p147 = scmp.eq.s32.totalorder %s11, 2
    %p148 = por %p146, %p147
    %p149 = scmp.ne.s32.totalorder %s141, %s144
    %p150 = scmp.eq.s32.totalorder %s11, 0
    %p151 = por %p149, %p150
    %p152 = scmp.ne.s32.totalorder %s141, %s144
    %p153 = scmp.eq.s32.totalorder %s16, 2
    %p154 = por %p152, %p153
    %p155 = scmp.ne.s32.totalorder %s144, %s145
    %p156 = scmp.eq.s32.totalorder %s16, 0
    %p157 = por %p155, %p156
    %p158 = scmp.ne.s32.totalorder %s144, %s145
    %p159 = scmp.eq.s32.totalorder %s17, 2
    %p160 = por %p158, %p159
    %p162 = scmp.ne.s32.totalorder %s145, %s161
    %p163 = scmp.eq.s32.totalorder %s17, 0
    %p164 = por %p162, %p163
    %p165 = scmp.le.s32.totalorder 1, %s11
    %p166 = scmp.lt.s32.totalorder %s11, 4
    %p167 = pnand %p165, %p166
    %p168 = pneg %p167
    // Predicated region
    $region9: #{tpu_custom_call.1} parent=5 // pred_check
      _
    $region10: #{tpu_custom_call.1} parent=5 // pred_check_branch
      %170 = sbr.rel (%p167) target = $region12
    $region11: #{tpu_custom_call.1} parent=5 // pred_region
      %s171 = ssub.s32 %s11, 1
      // Predicated region
      $region13: #{tpu_custom_call.1} parent=11 // pred_check
        %p172 = pneg %p58
      $region14: #{tpu_custom_call.1} parent=11 // pred_check_branch
        %174 = sbr.rel (%p172) target = $region16
      $region15: #{tpu_custom_call.1} parent=11 // pred_region
        _
      $region16: #{tpu_custom_call.1} parent=11 // pred_fallthru
        _
      // Predicated region
      $region17: #{tpu_custom_call.1} parent=11 // pred_check
        %p175 = pneg %p105
      $region18: #{tpu_custom_call.1} parent=11 // pred_check_branch
        %177 = sbr.rel (%p175) target = $region20
      $region19: #{tpu_custom_call.1} parent=11 // pred_region
        _
      $region20: #{tpu_custom_call.1} parent=11 // pred_fallthru
        _
    $region12: #{tpu_custom_call.1} parent=5 // pred_fallthru
      _
    %p178 = scmp.lt.s32.totalorder %s11, 3
    // Predicated region
    $region21: #{tpu_custom_call.1} parent=5 // pred_check
      %p179 = pneg %p178
    $region22: #{tpu_custom_call.1} parent=5 // pred_check_branch
      %181 = sbr.rel (%p179) target = $region24
    $region23: #{tpu_custom_call.1} parent=5 // pred_region
      // Predicated region
      $region25: #{tpu_custom_call.1} parent=23 // pred_check
        %p182 = pneg %p31
      $region26: #{tpu_custom_call.1} parent=23 // pred_check_branch
        %184 = sbr.rel (%p182) target = $region28
      $region27: #{tpu_custom_call.1} parent=23 // pred_region
        %p185 = scmp.lt.s32.totalorder %s11, 2
        %s186 = scalar_select %p185, %s11, 2
        %s187 = smul.addr %s186, 8
        %s188 = scalar_lea.vmem %s0, %s187
      $region28: #{tpu_custom_call.1} parent=23 // pred_fallthru
        _
      // Predicated region
      $region29: #{tpu_custom_call.1} parent=23 // pred_check
        %p189 = pneg %p78
      $region30: #{tpu_custom_call.1} parent=23 // pred_check_branch
        %191 = sbr.rel (%p189) target = $region32
      $region31: #{tpu_custom_call.1} parent=23 // pred_region
        %p192 = scmp.lt.s32.totalorder %s11, 2
        %s193 = scalar_select %p192, %s11, 2
        %s194 = smul.addr %s193, 8
        %s195 = scalar_lea.vmem %s2, %s194
      $region32: #{tpu_custom_call.1} parent=23 // pred_fallthru
        _
      // Predicated region
      $region33: #{tpu_custom_call.1} parent=23 // pred_check
        %p196 = pneg %p125
      $region34: #{tpu_custom_call.1} parent=23 // pred_check_branch
        %198 = sbr.rel (%p196) target = $region36
      $region35: #{tpu_custom_call.1} parent=23 // pred_region
        %p199 = scmp.lt.s32.totalorder %s11, 2
        %s200 = scalar_select %p199, %s11, 2
        %s201 = smul.addr %s200, 8
        %s202 = scalar_lea.vmem %s4, %s201
      $region36: #{tpu_custom_call.1} parent=23 // pred_fallthru
        _
    $region24: #{tpu_custom_call.1} parent=5 // pred_fallthru
      _
    %p203 = scmp.le.s32.totalorder 1, %s11
    %p204 = scmp.lt.s32.totalorder %s11, 4
    %p205 = pnand %p203, %p204
    %p206 = pneg %p205
    // Predicated region
    $region37: #{tpu_custom_call.1} parent=5 // pred_check
      _
    $region38: #{tpu_custom_call.1} parent=5 // pred_check_branch
      %208 = sbr.rel (%p205) target = $region40
    $region39: #{tpu_custom_call.1} parent=5 // pred_region
      %s209 = ssub.s32 %s11, 1
      %p210 = scmp.lt.s32.totalorder %s16, 2
      %s211 = scalar_select %p210, %s16, 2
      %s212 = smul.addr %s211, 8
      %s213 = scalar_lea.vmem %s0, %s212
      %p214 = pneg %p37
      %p215 = pneg %p34
      %p216 = pneg %p58
      %p217 = pneg %p55
      %p218 = scmp.lt.s32.totalorder %s16, 2
      %s219 = scalar_select %p218, %s16, 2
      %s220 = smul.addr %s219, 8
      %s221 = scalar_lea.vmem %s2, %s220
      %p222 = pneg %p84
      %p223 = pneg %p81
      %p224 = pneg %p105
      %p225 = pneg %p102
      %p226 = scmp.lt.s32.totalorder %s16, 2
      %s227 = scalar_select %p226, %s16, 2
      %s228 = smul.addr %s227, 8
      %s229 = scalar_lea.vmem %s4, %s228
      %p230 = pneg %p131
      %p231 = pneg %p128
      %p232 = pneg %p157
      %p233 = pneg %p154
      %p234 = scmp.lt.s32.totalorder %s16, 2
      %s235 = scalar_select %p234, %s16, 2
      %s236 = smul.addr %s235, 8
      %s237 = scalar_lea.vmem %s5, %s236
      %p238 = scmp.lt.s32.totalorder %s16, 2
      %s239 = scalar_select %p238, %s16, 2
      %s240 = smul.addr %s239, 8
      %s241 = scalar_lea.vmem %s0, %s240
      %p242 = scmp.lt.s32.totalorder %s16, 2
      %s243 = scalar_select %p242, %s16, 2
      %s244 = smul.addr %s243, 8
      %s245 = scalar_lea.vmem %s2, %s244
      %p246 = scmp.lt.s32.totalorder %s16, 2
      %s247 = scalar_select %p246, %s16, 2
      %s248 = smul.addr %s247, 8
      %s249 = scalar_lea.vmem %s4, %s248
      %p250 = scmp.lt.s32.totalorder %s16, 2
      %s251 = scalar_select %p250, %s16, 2
      %s252 = smul.addr %s251, 8
      %s253 = scalar_lea.vmem %s5, %s252
      %v254 = vld [vmem:[%s241] sm:$0xff]
      %v255 = vmul.f32 %v254, 10.0
      %v256 = vld [vmem:[%s1] sm:$0xff]
      %v257 = vld [vmem:[%s1 + $0x8] sm:$0xff]
      %v258 = vld [vmem:[%s1 + $0x10] sm:$0xff]
      %v259 = vld [vmem:[%s1 + $0x18] sm:$0xff]
      %v260 = vld [vmem:[%s1 + $0x20] sm:$0xff]
      %v261 = vld [vmem:[%s1 + $0x28] sm:$0xff]
      %v262 = vld [vmem:[%s1 + $0x30] sm:$0xff]
      %v263 = vld [vmem:[%s1 + $0x38] sm:$0xff]
      %v264 = vld [vmem:[%s1 + $0x40] sm:$0xff]
      %v265 = vld [vmem:[%s1 + $0x48] sm:$0xff]
      %v266 = vld [vmem:[%s1 + $0x50] sm:$0xff]
      %v267 = vld [vmem:[%s1 + $0x58] sm:$0xff]
      %v268 = vld [vmem:[%s1 + $0x60] sm:$0xff]
      %v269 = vld [vmem:[%s1 + $0x68] sm:$0xff]
      %v270 = vld [vmem:[%s1 + $0x70] sm:$0xff]
      %v271 = vld [vmem:[%s1 + $0x78] sm:$0xff]
      %272 = vmatpush.msra.mxu0 %v271
      %273 = vmatpush.msra.mxu0 %v270
      %274 = vmatpush.msra.mxu0 %v269
      %275 = vmatpush.msra.mxu0 %v268
      %276 = vmatpush.msra.mxu0 %v267
      %277 = vmatpush.msra.mxu0 %v266
      %278 = vmatpush.msra.mxu0 %v265
      %279 = vmatpush.msra.mxu0 %v264
      %280 = vmatpush.msra.mxu0 %v263
      %281 = vmatpush.msra.mxu0 %v262
      %282 = vmatpush.msra.mxu0 %v261
      %283 = vmatpush.msra.mxu0 %v260
      %284 = vmatpush.msra.mxu0 %v259
      %285 = vmatpush.msra.mxu0 %v258
      %286 = vmatpush.msra.mxu0 %v257
      %287 = vmatpush.msra.mxu0 %v256
      %288 = vmatmul.f32.gmra.mxu0 %v255
      %v289 = vpop.f32.mrf.mxu0
      %v290 = vadd.f32 0.0, %v289
      %291 = vdwg.mxu0
      %vm292 = vcmask 195584
      %v293 = vsel %vm292, %v290, -inf
      %294 = vmax.xlane.f32.xlu0 %v293
      %v295 = vpop.xlane.xlu0 %294
      %v296 = vsub.f32 %v290, %v295
      %s297 = smul.u32 %s16, 8
      %v298 = vlaneseq
      %v299 = vshrl.u32 %v298, 7
      %v300 = vstv %s297
      %v301 = vadd.s32 %v300, %v299
      %v302 = vlaneseq
      %v303 = vand.u32 %v302, 127
      %vm304 = vcmp.eq.s32.totalorder %v301, %v303
      %vm305 = vcmp.ge.s32.totalorder %v303, 18
      %v306 = vsel %vm305, 1, 0
      %vm307 = vcmp.eq.s32.totalorder %v306, 1
      %vm308 = vmor %vm304, %vm307
      %v309 = vsel %vm308, -inf, %v296
      %v310 = vmul.f32 %v309, 1.442695
      %v311 = vpow.pop %v310
      %v312 = vsel %vm292, %v311, 0.0
      %313 = vadd.xlane.f32.xlu0 %v312
      %v314 = vpop.xlane.xlu0 %313
      %v315 = vlog2.pop %v314
      %v316 = vmul.f32 %v315, 0.6931472
      %v317 = vld [vmem:[%s245] sm:$0xff]
      %v318 = vld [vmem:[%s3] sm:$0x1]
      %319 = vset.pattern.permute.xlu0 0
      %320 = vperm.xlu0 %319, %v317
      %v321 = vpop.permute.xlu0 %320
      %v322 = vperm.slane %v318, 0
      %vm323 = vcmp.eq.s32.totalorder %v321, %v322
      %vm324 = vmxor %vm308, 1
      %vm325 = vmand %vm323, %vm324
      %v326 = vsel %vm325, %v296, 0.0
      %v327 = vsel %vm292, %v326, 0.0
      %328 = vadd.xlane.f32.xlu0 %v327
      %v329 = vpop.xlane.xlu0 %328
      %v330 = vld [vmem:[%s249] sm:$0xff]
      %v331 = vrcp.pop %v330
      %v332 = vmul.f32 %v330, %v331
      %v333 = vsub.f32 1.0, %v332
      %v334 = vmul.f32 %v331, %v333
      %v335 = vadd.f32 %v331, %v334
      %vm336 = vweird.f32 %v330
      %vm337 = vweird.f32 %v331
      %vm338 = vmor %vm336, %vm337
      %v339 = vsel %vm338, %v331, %v335
      %v340 = vand.u32 2147483647, %v330
      %vm341 = vcmp.eq.f32.partialorder %v340, 8.507059e+37
      %v342 = vand.u32 %v330, 2147483648
      %v343 = vor.u32 1.1754944e-38, %v342
      %v344 = vsel %vm341, %v343, %v339
      %v345 = vmul.f32 %v329, %v344
      %v346 = vsub.f32 %v345, %v316
      %v347 = vmul.f32 %v346, -1.4285715
      %vm348 = vcmask 7168
      %349 = vst.msk [vmem:[%s253] sm:$0xff] %vm348, %v347
      %p350 = scmp.lt.s32.totalorder %s16, 2
      %s351 = scalar_select %p350, %s16, 2
      %s352 = smul.addr %s351, 8
      %s353 = scalar_lea.vmem %s5, %s352
      // Predicated region
      $region41: #{tpu_custom_call.1} parent=39 // pred_check
        %p354 = pneg %p154
      $region42: #{tpu_custom_call.1} parent=39 // pred_check_branch
        %356 = sbr.rel (%p354) target = $region44
      $region43: #{tpu_custom_call.1} parent=39 // pred_region
        _
      $region44: #{tpu_custom_call.1} parent=39 // pred_fallthru
        _
    $region40: #{tpu_custom_call.1} parent=5 // pred_fallthru
      _
    %p357 = scmp.le.s32.totalorder 2, %s11
    // Predicated region
    $region45: #{tpu_custom_call.1} parent=5 // pred_check
      %p358 = pneg %p357
    $region46: #{tpu_custom_call.1} parent=5 // pred_check_branch
      %360 = sbr.rel (%p358) target = $region48
    $region47: #{tpu_custom_call.1} parent=5 // pred_region
      %s361 = ssub.s32 %s11, 2
      // Predicated region
      $region49: #{tpu_custom_call.1} parent=47 // pred_check
        %p362 = pneg %p160
      $region50: #{tpu_custom_call.1} parent=47 // pred_check_branch
        %364 = sbr.rel (%p362) target = $region52
      $region51: #{tpu_custom_call.1} parent=47 // pred_region
        %p365 = scmp.lt.s32.totalorder %s17, 2
        %s366 = scalar_select %p365, %s17, 2
        %s367 = smul.addr %s366, 8
        %s368 = scalar_lea.vmem %s5, %s367
      $region52: #{tpu_custom_call.1} parent=47 // pred_fallthru
        _
    $region48: #{tpu_custom_call.1} parent=5 // pred_fallthru
      _
  $region6: #{tpu_custom_call.1} parent=0 // loop_footer
    %s15 = sadd.s32 1, %s11
  $region7: #{tpu_custom_call.1} parent=0 // loop_footer_branch
    %10 = sbr.rel target = $region3
  $region8: #{tpu_custom_call.1} parent=0 // loop_exit
    _

</llo_original>
